<compile_context>
chip_gen: v6e
topology: v6e:2x2x1
jax: 0.10.0
libtpu: 0.0.40
codegen_flags: <defaults>
</compile_context>

<pallas_src>
import functools
import math
import numpy as np
import jax
import jax.numpy as jnp
from jax.experimental import pallas as pl
from jax.experimental.pallas import tpu as pltpu

BN_SCALE = float(1.0 / np.sqrt(1.0 + 1e-5))   # BatchNorm1d eval with fresh stats


# ----------------------------------------------------------------------------
# Pallas kernels
# ----------------------------------------------------------------------------

def _ln(x, w, b, eps=1e-5):
    mu = jnp.mean(x, axis=-1, keepdims=True)
    var = jnp.mean(jnp.square(x - mu), axis=-1, keepdims=True)
    return (x - mu) * jax.lax.rsqrt(var + eps) * w + b


def _linear_kernel(x_ref, w_ref, b_ref, o_ref, *, scale, relu):
    y = jnp.dot(x_ref[...].astype(jnp.bfloat16), w_ref[...].astype(jnp.bfloat16),
                preferred_element_type=jnp.float32) + b_ref[...]
    if scale != 1.0:
        y = y * scale
    if relu:
        y = jnp.maximum(y, 0.0)
    o_ref[...] = y


def pallas_linear(x, w_t, b, *, scale=1.0, relu=False, block_m=1024):
    """x @ w_t + b with fused (optional) BN-eval scale and ReLU.
    w_t is stored pre-transposed as (in, out); b as (1, out)."""
    M, K = x.shape
    N = w_t.shape[1]
    kernel = functools.partial(_linear_kernel, scale=float(scale), relu=bool(relu))
    # Row tiling only kicks in at production sizes; toy shapes use one block.
    # TODO(synk): add K/N tiling for very large feature dims (v7x 64 MiB VMEM).
    if M > block_m and M % block_m == 0:
        bm = block_m
        grid = (M // bm,)
    else:
        bm = M
        grid = (1,)
    return pl.pallas_call(
        kernel,
        grid=grid,
        in_specs=[pl.BlockSpec((bm, K), lambda i: (i, 0)),
                  pl.BlockSpec((K, N), lambda i: (0, 0)),
                  pl.BlockSpec((1, N), lambda i: (0, 0))],
        out_specs=pl.BlockSpec((bm, N), lambda i: (i, 0)),
        out_shape=jax.ShapeDtypeStruct((M, N), jnp.float32),
        compiler_params=pltpu.CompilerParams(dimension_semantics=("parallel",)),
    )(x, w_t, b)


def _mlp2_kernel(x_ref, w1_ref, b1_ref, w2_ref, b2_ref, o_ref, *, scale):
    h = jnp.dot(x_ref[...].astype(jnp.bfloat16), w1_ref[...].astype(jnp.bfloat16),
                preferred_element_type=jnp.float32) + b1_ref[...]
    h = jnp.maximum(h * scale, 0.0)
    o = jnp.dot(h.astype(jnp.bfloat16), w2_ref[...].astype(jnp.bfloat16),
                preferred_element_type=jnp.float32) + b2_ref[...]
    o_ref[...] = jnp.maximum(o * scale, 0.0)


def pallas_mlp2(x, w1_t, b1, w2_t, b2):
    """Fused Linear-BN(eval)-ReLU-Linear-BN(eval)-ReLU (encoder MLP / SE)."""
    M, K = x.shape
    H1 = w1_t.shape[1]
    N = w2_t.shape[1]
    kernel = functools.partial(_mlp2_kernel, scale=BN_SCALE)
    return pl.pallas_call(
        kernel,
        grid=(1,),
        in_specs=[pl.BlockSpec((M, K), lambda i: (0, 0)),
                  pl.BlockSpec((K, H1), lambda i: (0, 0)),
                  pl.BlockSpec((1, H1), lambda i: (0, 0)),
                  pl.BlockSpec((H1, N), lambda i: (0, 0)),
                  pl.BlockSpec((1, N), lambda i: (0, 0))],
        out_specs=pl.BlockSpec((M, N), lambda i: (0, 0)),
        out_shape=jax.ShapeDtypeStruct((M, N), jnp.float32),
    )(x, w1_t, b1, w2_t, b2)


def _transformer_kernel(q_ref, kv_ref,
                        wq_ref, bq_ref, wkv_ref, bkv_ref,
                        wo_ref, bo_ref, ln1w_ref, ln1b_ref,
                        w1_ref, b1_ref, w2_ref, b2_ref,
                        ln2w_ref, ln2b_ref,
                        *out_refs, num_heads, ln_eps=1e-5):
    """Whole ModuleTransformer for one batch element, fully in VMEM."""
    x_ref = out_refs[0]
    need_attn = len(out_refs) > 1

    q = q_ref[0]                      # (L, E) f32
    kv = kv_ref[0]                    # (S, E) f32 (keys == values in this model)
    L, E = q.shape
    S = kv.shape[0]
    hd = E // num_heads
    scale = 1.0 / math.sqrt(hd)

    # fused projections: Q in one matmul, K and V together in one (S, 2E) matmul
    qp = jnp.dot(q.astype(jnp.bfloat16), wq_ref[...].astype(jnp.bfloat16),
                 preferred_element_type=jnp.float32) + bq_ref[...]
    kvp = jnp.dot(kv.astype(jnp.bfloat16), wkv_ref[...].astype(jnp.bfloat16),
                  preferred_element_type=jnp.float32) + bkv_ref[...]
    kp = kvp[:, :E]
    vp = kvp[:, E:]

    wo = wo_ref[...]
    out = jnp.zeros((L, E), jnp.float32)
    attn_acc = jnp.zeros((L, S), jnp.float32)
    for h in range(num_heads):                          # static unroll
        sl = slice(h * hd, (h + 1) * hd)
        qh = qp[:, sl].astype(jnp.bfloat16)
        kh = kp[:, sl].astype(jnp.bfloat16)
        vh = vp[:, sl].astype(jnp.bfloat16)
        s = jax.lax.dot_general(qh, kh, (((1,), (1,)), ((), ())),
                                preferred_element_type=jnp.float32) * scale
        s = s - jnp.max(s, axis=-1, keepdims=True)
        e = jnp.exp(s)
        p = e * pl.reciprocal(jnp.sum(e, axis=-1, keepdims=True), approx=True)
        oh = jnp.dot(p.astype(jnp.bfloat16), vh, preferred_element_type=jnp.float32)
        # fold the output projection in per head (avoids a head-concat)
        out = out + jnp.dot(oh.astype(jnp.bfloat16),
                            wo[sl, :].astype(jnp.bfloat16),
                            preferred_element_type=jnp.float32)
        if need_attn:
            attn_acc = attn_acc + p

    x1 = _ln(out + bo_ref[...], ln1w_ref[...], ln1b_ref[...], ln_eps)
    h1 = jnp.maximum(
        jnp.dot(x1.astype(jnp.bfloat16), w1_ref[...].astype(jnp.bfloat16),
                preferred_element_type=jnp.float32) + b1_ref[...], 0.0)
    h2 = jnp.dot(h1.astype(jnp.bfloat16), w2_ref[...].astype(jnp.bfloat16),
                 preferred_element_type=jnp.float32) + b2_ref[...]
    x_ref[0] = _ln(x1 + h2, ln2w_ref[...], ln2b_ref[...], ln_eps)
    if need_attn:
        out_refs[1][0] = attn_acc * (1.0 / num_heads)   # head-averaged attn


def pallas_transformer(q_b, kv_b, p, num_heads, need_attn):
    """ModuleTransformer. q_b: (N, L, E), kv_b: (N, S, E), both batch-major."""
    N, L, E = q_b.shape
    S = kv_b.shape[1]
    kernel = functools.partial(_transformer_kernel, num_heads=num_heads)
    weights = (p['wq_t'], p['bq'], p['wkv_t'], p['bkv'],
               p['wo_t'], p['bo'], p['ln1_w'], p['ln1_b'],
               p['mlp_w1_t'], p['mlp_b1'], p['mlp_w2_t'], p['mlp_b2'],
               p['ln2_w'], p['ln2_b'])
    w_specs = [pl.BlockSpec(w.shape, lambda i: (0, 0)) for w in weights]
    out_shape = [jax.ShapeDtypeStruct((N, L, E), jnp.float32)]
    out_specs = [pl.BlockSpec((1, L, E), lambda i: (i, 0, 0))]
    if need_attn:
        out_shape.append(jax.ShapeDtypeStruct((N, L, S), jnp.float32))
        out_specs.append(pl.BlockSpec((1, L, S), lambda i: (i, 0, 0)))
    res = pl.pallas_call(
        kernel,
        grid=(N,),
        in_specs=[pl.BlockSpec((1, L, E), lambda i: (i, 0, 0)),
                  pl.BlockSpec((1, S, E), lambda i: (i, 0, 0))] + w_specs,
        out_specs=tuple(out_specs),
        out_shape=tuple(out_shape),
        compiler_params=pltpu.CompilerParams(dimension_semantics=("parallel",)),
    )(q_b, kv_b, *weights)
    if need_attn:
        return res[0], res[1]
    x = res[0] if isinstance(res, (tuple, list)) else res
    return x, None


def _gin_sa_kernel(adj_ref, v_ref, q_ref, w1_ref, b1_ref, w2_ref, b2_ref,
                   h_ref, x_ref, *, eps, bn_scale):
    """Per-window: GIN aggregate + 2x(Linear/BN/ReLU) + spatial-attn pooling."""
    adj = adj_ref[0]                        # (n, n) dense 0/1 adjacency block
    v = v_ref[0]                            # (n, H)
    agg = jnp.dot(adj.astype(jnp.bfloat16), v.astype(jnp.bfloat16),
                  preferred_element_type=jnp.float32) + eps * v
    h1 = jnp.maximum(
        (jnp.dot(agg.astype(jnp.bfloat16), w1_ref[...].astype(jnp.bfloat16),
                 preferred_element_type=jnp.float32) + b1_ref[...]) * bn_scale, 0.0)
    h2 = jnp.maximum(
        (jnp.dot(h1.astype(jnp.bfloat16), w2_ref[...].astype(jnp.bfloat16),
                 preferred_element_type=jnp.float32) + b2_ref[...]) * bn_scale, 0.0)
    h_ref[0] = h2
    # spatial attention pooling:  SA = softmax_n(h @ q^T) + 1 ; out = sum_n h*SA
    q = q_ref[0]                            # (1, H)
    s = jnp.sum(h2 * q, axis=1, keepdims=True)                 # (n, 1)
    s = s - jnp.max(s, axis=0, keepdims=True)
    e = jnp.exp(s)
    sa = e * pl.reciprocal(jnp.sum(e, axis=0, keepdims=True), approx=True) + 1.0
    x_ref[0] = jnp.sum(h2 * sa, axis=0, keepdims=True)


def pallas_gin_sa(adj, v, q_s, lp):
    """adj: (B*Tw, n, n), v: (B*Tw, n, H), q_s: (B*Tw, 1, H)."""
    B, n, _ = adj.shape
    H = v.shape[-1]
    kernel = functools.partial(_gin_sa_kernel, eps=float(lp['gin_eps']),
                               bn_scale=BN_SCALE)
    h_out, x_dec = pl.pallas_call(
        kernel,
        grid=(B,),
        in_specs=[pl.BlockSpec((1, n, n), lambda i: (i, 0, 0)),
                  pl.BlockSpec((1, n, H), lambda i: (i, 0, 0)),
                  pl.BlockSpec((1, 1, H), lambda i: (i, 0, 0)),
                  pl.BlockSpec((H, H), lambda i: (0, 0)),
                  pl.BlockSpec((1, H), lambda i: (0, 0)),
                  pl.BlockSpec((H, H), lambda i: (0, 0)),
                  pl.BlockSpec((1, H), lambda i: (0, 0))],
        out_specs=(pl.BlockSpec((1, n, H), lambda i: (i, 0, 0)),
                   pl.BlockSpec((1, 1, H), lambda i: (i, 0, 0))),
        out_shape=(jax.ShapeDtypeStruct((B, n, H), jnp.float32),
                   jax.ShapeDtypeStruct((B, 1, H), jnp.float32)),
        compiler_params=pltpu.CompilerParams(dimension_semantics=("parallel",)),
    )(adj, v, q_s, lp['gin_w1_t'], lp['gin_b1'], lp['gin_w2_t'], lp['gin_b2'])
    return h_out, x_dec[:, 0, :]


def _lstm_kernel(xw_ref, whh_ref, y_ref, h_sc, c_sc, *, hidden):
    t = pl.program_id(0)

    @pl.when(t == 0)
    def _():
        h_sc[...] = jnp.zeros_like(h_sc)
        c_sc[...] = jnp.zeros_like(c_sc)

    H = hidden
    # x@W_ih + biases precomputed outside the recurrence; only h@W_hh here.
    gates = xw_ref[0] + jnp.dot(h_sc[...].astype(jnp.bfloat16),
                                whh_ref[...].astype(jnp.bfloat16),
                                preferred_element_type=jnp.float32)     # (B, 4H)
    sig = jax.nn.sigmoid(gates[:, :3 * H])        # gates reordered to (i, f, o, g)
    i = sig[:, :H]
    f = sig[:, H:2 * H]
    o = sig[:, 2 * H:3 * H]
    g = jnp.tanh(gates[:, 3 * H:])
    c = f * c_sc[...] + i * g
    h = o * jnp.tanh(c)
    c_sc[...] = c
    h_sc[...] = h
    y_ref[0] = h


def pallas_lstm(x, p):
    """Single-layer LSTM over (T, B, H), zero initial state."""
    T, B, H = x.shape
    xw = pallas_linear(x.reshape(T * B, H), p['lstm_wih_t'], p['lstm_b'])
    xw = xw.reshape(T, B, 4 * H)
    kernel = functools.partial(_lstm_kernel, hidden=H)
    return pl.pallas_call(
        kernel,
        grid=(T,),
        in_specs=[pl.BlockSpec((1, B, 4 * H), lambda t: (t, 0, 0)),
                  pl.BlockSpec((H, 4 * H), lambda t: (0, 0))],
        out_specs=pl.BlockSpec((1, B, H), lambda t: (t, 0, 0)),
        out_shape=jax.ShapeDtypeStruct((T, B, H), jnp.float32),
        scratch_shapes=[pltpu.VMEM((B, H), jnp.float32),
                        pltpu.VMEM((B, H), jnp.float32)],
        compiler_params=pltpu.CompilerParams(dimension_semantics=("arbitrary",)),
    )(xw, p['lstm_whh_t'])


# ----------------------------------------------------------------------------
# Module composition (JAX glue only for reshapes / percentile / stacking)
# ----------------------------------------------------------------------------

def brain_encoder(t, a, p):
    T_full, bsz, n_region = t.shape
    H = p['mlp_w1_t'].shape[1]
    X = jnp.transpose(t, (1, 0, 2)).reshape(bsz * T_full, n_region)   # (b t) c
    X = pallas_mlp2(X, p['mlp_w1_t'], p['mlp_b1'], p['mlp_w2_t'], p['mlp_b2'])
    X = X.reshape(bsz, T_full, H).transpose(1, 0, 2)                  # (T, B, H)
    X = pallas_lstm(X, p)
    Xb = jnp.transpose(X, (1, 0, 2))                                  # (B, T, H)
    Xb, _ = pallas_transformer(Xb, Xb, p['tatt'], num_heads=1, need_attn=False)
    A = a.reshape(bsz, n_region * n_region)
    e_s = pallas_mlp2(A, p['se_w1_t'], p['se_b1'], p['se_w2_t'], p['se_b2'])
    return Xb, e_s                                                    # batch-major


def brain_decoder(dyn_t, dyn_a, e_s, X_enc_b, sampling_endpoints, params, sparsity):
    b, tw, n, w = dyn_t.shape
    H = params['init_w_t'].shape[1]

    h = pallas_linear(dyn_t.reshape(b * tw * n, w), params['init_w_t'], params['init_b'])
    h = h.reshape(b * tw, n, H)

    # _collate_adjacency: per-window percentile threshold -> dense 0/1 block adjacency.
    # TODO(synk): percentile/sort kept as XLA glue (no clean small Pallas equivalent).
    thr = jnp.percentile(dyn_a.reshape(b, tw, n * n), 100.0 - sparsity, axis=-1)
    adj = (dyn_a > thr[:, :, None, None]).astype(jnp.float32).reshape(b * tw, n, n)

    idx = jnp.asarray([pt - 1 for pt in sampling_endpoints], dtype=jnp.int32)
    # q_s[b, t] = e_s[b] + X_enc[endpoint_t - 1, b]   (same for every layer)
    q_s = (e_s[:, None, :] + X_enc_b[:, idx, :]).reshape(b * tw, 1, H)

    num_classes = params['layers'][0]['cls_w_t'].shape[1]
    logit = jnp.zeros((b, num_classes), jnp.float32)
    att_list = []

    for lp in params['layers']:
        # one fused kernel per (batch, window): GIN aggregate + GIN MLP + SA-pool
        h, x_dec = pallas_gin_sa(adj, h, q_s, lp)
        X_dec = x_dec.reshape(b, tw, H)                          # batch-major
        h_attend, time_attn = pallas_transformer(
            X_dec, X_enc_b, lp['transformer'],
            num_heads=params['num_heads'], need_attn=True)
        h_dyn = h_attend.sum(axis=1)                             # cls_token = sum over time
        logit = logit + pallas_linear(h_dyn, lp['cls_w_t'], lp['cls_b'])  # dropout=identity
        att_list.append(time_attn)

    tatt = jnp.stack(att_list, axis=1)                           # (b, layers, tw, T)
    return logit, tatt


def brainnetformer_forward(dyn_t, dyn_a, t, a, sampling_endpoints, params, sparsity):
    X_enc_b, e_s = brain_encoder(t, a, params['encoder'])
    return brain_decoder(dyn_t, dyn_a, e_s, X_enc_b, sampling_endpoints,
                         params['decoder'], sparsity)


# ----------------------------------------------------------------------------
# Deterministic parameter init (kernel-ready layouts: weights (in,out), bias (1,out))
# ----------------------------------------------------------------------------

def init_params(key, n_region, hidden_dim, num_classes, num_heads, num_layers, window_size):
    keys = iter(jax.random.split(key, 64))

    def lin_t(in_f, out_f):
        k1, k2 = jax.random.split(next(keys))
        bound = 1.0 / np.sqrt(in_f)
        w = jax.random.uniform(k1, (out_f, in_f), jnp.float32, -bound, bound)
        b = jax.random.uniform(k2, (1, out_f), jnp.float32, -bound, bound)
        return jnp.transpose(w), b             # transposed ONCE at init

    def transformer(embed, hid):
        bnd = 1.0 / np.sqrt(embed)
        in_w = jax.random.uniform(next(keys), (3 * embed, embed), jnp.float32, -bnd, bnd)
        wq_t = jnp.transpose(in_w[:embed])     # (E, E)
        wkv_t = jnp.transpose(in_w[embed:])    # (E, 2E) — fused K/V projection
        wo_t, _ = lin_t(embed, embed)
        w1_t, b1 = lin_t(embed, hid)
        w2_t, b2 = lin_t(hid, embed)
        z = lambda m: jnp.zeros((1, m), jnp.float32)
        one = lambda m: jnp.ones((1, m), jnp.float32)
        return dict(wq_t=wq_t, bq=z(embed), wkv_t=wkv_t, bkv=z(2 * embed),
                    wo_t=wo_t, bo=z(embed),
                    ln1_w=one(embed), ln1_b=z(embed),
                    ln2_w=one(embed), ln2_b=z(embed),
                    mlp_w1_t=w1_t, mlp_b1=b1, mlp_w2_t=w2_t, mlp_b2=b2)

    H = hidden_dim
    enc = {}
    enc['mlp_w1_t'], enc['mlp_b1'] = lin_t(n_region, H)
    enc['mlp_w2_t'], enc['mlp_b2'] = lin_t(H, H)
    # LSTM: PyTorch gate order (i,f,g,o) reordered to (i,f,o,g) so the three
    # sigmoid gates are one contiguous 96-lane slice inside the kernel.
    bl = 1.0 / np.sqrt(H)
    w_ih = jax.random.uniform(next(keys), (4 * H, H), jnp.float32, -bl, bl)
    w_hh = jax.random.uniform(next(keys), (4 * H, H), jnp.float32, -bl, bl)
    b_ih = jax.random.uniform(next(keys), (4 * H,), jnp.float32, -bl, bl)
    b_hh = jax.random.uniform(next(keys), (4 * H,), jnp.float32, -bl, bl)

    def reorder(m):                           # blocks (i,f,g,o) -> (i,f,o,g)
        return jnp.concatenate([m[:2 * H], m[3 * H:], m[2 * H:3 * H]], axis=0)

    enc['lstm_wih_t'] = jnp.transpose(reorder(w_ih))           # (H, 4H)
    enc['lstm_whh_t'] = jnp.transpose(reorder(w_hh))           # (H, 4H)
    enc['lstm_b'] = reorder(b_ih + b_hh).reshape(1, 4 * H)
    enc['tatt'] = transformer(H, 2 * H)
    enc['se_w1_t'], enc['se_b1'] = lin_t(n_region * n_region, H)
    enc['se_w2_t'], enc['se_b2'] = lin_t(H, H)

    dec = {'num_heads': num_heads}
    dec['init_w_t'], dec['init_b'] = lin_t(window_size, H)
    layers = []
    for _ in range(num_layers):
        lp = {}
        lp['gin_eps'] = 0.0                   # nn.Parameter([[0.0]]) initial value
        lp['gin_w1_t'], lp['gin_b1'] = lin_t(H, H)
        lp['gin_w2_t'], lp['gin_b2'] = lin_t(H, H)
        lp['transformer'] = transformer(H, 2 * H)
        lp['cls_w_t'], lp['cls_b'] = lin_t(H, num_classes)
        layers.append(lp)
    dec['layers'] = layers
    return dict(encoder=enc, decoder=dec)


# ----------------------------------------------------------------------------
if __name__ == "__main__":
    n_region, hidden_dim, num_classes = 8, 32, 3
    num_heads, num_layers, sparsity, window_size = 2, 2, 30, 16
    T_full, bsz, tw = 16, 2, 4

    key = jax.random.PRNGKey(0)
    kp, k1, k2, k3, k4 = jax.random.split(key, 5)
    params = init_params(kp, n_region, hidden_dim, num_classes,
                         num_heads, num_layers, window_size)

    dyn_t = jax.random.normal(k1, (bsz, tw, n_region, window_size), jnp.float32)
    dyn_a = jax.random.normal(k2, (bsz, tw, n_region, n_region), jnp.float32)
    t_in = jax.random.normal(k3, (T_full, bsz, n_region), jnp.float32)
    a_in = jax.random.normal(k4, (bsz, n_region, n_region), jnp.float32)
    sampling_endpoints = [4, 8, 12, 16]        # one endpoint per dynamic window

    logit, time_attention = brainnetformer_forward(
        dyn_t, dyn_a, t_in, a_in, sampling_endpoints, params, sparsity)
    jax.block_until_ready((logit, time_attention))

    assert logit.shape == (bsz, num_classes)
    assert time_attention.shape == (bsz, num_layers, tw, T_full)
    assert bool(jnp.all(jnp.isfinite(logit)))
    assert bool(jnp.all(jnp.isfinite(time_attention)))
    print("KERNEL_OK")
</pallas_src>

<mosaic_0001>
module attributes {stable_mosaic.version = 11 : i64} {
  func.func @_mlp2_kernel(%arg0: i32, %arg1: memref<32x8xf32, #tpu.memory_space<vmem>>, %arg2: memref<8x32xf32, #tpu.memory_space<vmem>>, %arg3: memref<1x32xf32, #tpu.memory_space<vmem>>, %arg4: memref<32x32xf32, #tpu.memory_space<vmem>>, %arg5: memref<1x32xf32, #tpu.memory_space<vmem>>, %arg6: memref<32x32xf32, #tpu.memory_space<vmem>>) attributes {dimension_semantics = [#tpu.dimension_semantics<arbitrary>], iteration_bounds = array<i64: 1>, scalar_prefetch = 0 : i64, scratch_operands = 0 : i64, tpu.core_type = #tpu.core_type<tc>, window_params = [{pipeline_mode = #tpu.pipeline_mode<synchronous>, transform_indices = @transform_0, window_bounds = array<i64: 32, 8>}, {pipeline_mode = #tpu.pipeline_mode<synchronous>, transform_indices = @transform_1, window_bounds = array<i64: 8, 32>}, {pipeline_mode = #tpu.pipeline_mode<synchronous>, transform_indices = @transform_2, window_bounds = array<i64: 1, 32>}, {pipeline_mode = #tpu.pipeline_mode<synchronous>, transform_indices = @transform_3, window_bounds = array<i64: 32, 32>}, {pipeline_mode = #tpu.pipeline_mode<synchronous>, transform_indices = @transform_4, window_bounds = array<i64: 1, 32>}, {pipeline_mode = #tpu.pipeline_mode<synchronous>, transform_indices = @transform_5, window_bounds = array<i64: 32, 32>}]} {
    %c0 = arith.constant 0 : index
    %c0_0 = arith.constant 0 : index
    %0 = vector.load %arg1[%c0, %c0_0] : memref<32x8xf32, #tpu.memory_space<vmem>>, vector<32x8xf32>
    %1 = arith.truncf %0 : vector<32x8xf32> to vector<32x8xbf16>
    %c0_1 = arith.constant 0 : index
    %c0_2 = arith.constant 0 : index
    %2 = vector.load %arg2[%c0_1, %c0_2] : memref<8x32xf32, #tpu.memory_space<vmem>>, vector<8x32xf32>
    %3 = arith.truncf %2 : vector<8x32xf32> to vector<8x32xbf16>
    %cst = arith.constant dense<0.000000e+00> : vector<32x32xf32>
    %4 = tpu.matmul %1, %3, %cst {dimension_numbers = #tpu.dot_dimension_numbers<[1], [0], [0], [1], [0, 0, 1, 1], [], []>} : vector<32x8xbf16>, vector<8x32xbf16>, vector<32x32xf32> -> vector<32x32xf32>
    %c0_3 = arith.constant 0 : index
    %c0_4 = arith.constant 0 : index
    %5 = vector.load %arg3[%c0_3, %c0_4] : memref<1x32xf32, #tpu.memory_space<vmem>>, vector<1x32xf32>
    %6 = vector.broadcast %5 : vector<1x32xf32> to vector<32x32xf32>
    %7 = arith.addf %4, %6 : vector<32x32xf32>
    %cst_5 = arith.constant 0.999994993 : f32
    %8 = vector.broadcast %cst_5 : f32 to vector<32x32xf32>
    %9 = arith.mulf %7, %8 : vector<32x32xf32>
    %cst_6 = arith.constant 0.000000e+00 : f32
    %10 = vector.broadcast %cst_6 : f32 to vector<32x32xf32>
    %11 = arith.maximumf %9, %10 : vector<32x32xf32>
    %12 = arith.truncf %11 : vector<32x32xf32> to vector<32x32xbf16>
    %c0_7 = arith.constant 0 : index
    %c0_8 = arith.constant 0 : index
    %13 = vector.load %arg4[%c0_7, %c0_8] : memref<32x32xf32, #tpu.memory_space<vmem>>, vector<32x32xf32>
    %14 = arith.truncf %13 : vector<32x32xf32> to vector<32x32xbf16>
    %cst_9 = arith.constant dense<0.000000e+00> : vector<32x32xf32>
    %15 = tpu.matmul %12, %14, %cst_9 {dimension_numbers = #tpu.dot_dimension_numbers<[1], [0], [0], [1], [0, 0, 1, 1], [], []>} : vector<32x32xbf16>, vector<32x32xbf16>, vector<32x32xf32> -> vector<32x32xf32>
    %c0_10 = arith.constant 0 : index
    %c0_11 = arith.constant 0 : index
    %16 = vector.load %arg5[%c0_10, %c0_11] : memref<1x32xf32, #tpu.memory_space<vmem>>, vector<1x32xf32>
    %17 = vector.broadcast %16 : vector<1x32xf32> to vector<32x32xf32>
    %18 = arith.addf %15, %17 : vector<32x32xf32>
    %cst_12 = arith.constant 0.999994993 : f32
    %19 = vector.broadcast %cst_12 : f32 to vector<32x32xf32>
    %20 = arith.mulf %18, %19 : vector<32x32xf32>
    %cst_13 = arith.constant 0.000000e+00 : f32
    %21 = vector.broadcast %cst_13 : f32 to vector<32x32xf32>
    %22 = arith.maximumf %20, %21 : vector<32x32xf32>
    %c0_14 = arith.constant 0 : index
    %c0_15 = arith.constant 0 : index
    %23 = vector.load %arg6[%c0_14, %c0_15] : memref<32x32xf32, #tpu.memory_space<vmem>>, vector<32x32xf32>
    tpu.vector_store %arg6[%c0_14, %c0_15], %22 {strides = array<i32>} : memref<32x32xf32, #tpu.memory_space<vmem>>, vector<32x32xf32>,
    return
  }
  func.func @transform_0(%arg0: i32) -> (i32, i32) {
    %c0_i32 = arith.constant 0 : i32
    %c0_i32_0 = arith.constant 0 : i32
    %c0_i32_1 = arith.constant 0 : i32
    return %c0_i32, %c0_i32_0 : i32, i32
  }
  func.func @transform_1(%arg0: i32) -> (i32, i32) {
    %c0_i32 = arith.constant 0 : i32
    %c0_i32_0 = arith.constant 0 : i32
    %c0_i32_1 = arith.constant 0 : i32
    return %c0_i32, %c0_i32_0 : i32, i32
  }
  func.func @transform_2(%arg0: i32) -> (i32, i32) {
    %c0_i32 = arith.constant 0 : i32
    %c0_i32_0 = arith.constant 0 : i32
    %c0_i32_1 = arith.constant 0 : i32
    return %c0_i32, %c0_i32_0 : i32, i32
  }
  func.func @transform_3(%arg0: i32) -> (i32, i32) {
    %c0_i32 = arith.constant 0 : i32
    %c0_i32_0 = arith.constant 0 : i32
    %c0_i32_1 = arith.constant 0 : i32
    return %c0_i32, %c0_i32_0 : i32, i32
  }
  func.func @transform_4(%arg0: i32) -> (i32, i32) {
    %c0_i32 = arith.constant 0 : i32
    %c0_i32_0 = arith.constant 0 : i32
    %c0_i32_1 = arith.constant 0 : i32
    return %c0_i32, %c0_i32_0 : i32, i32
  }
  func.func @transform_5(%arg0: i32) -> (i32, i32) {
    %c0_i32 = arith.constant 0 : i32
    %c0_i32_0 = arith.constant 0 : i32
    %c0_i32_1 = arith.constant 0 : i32
    return %c0_i32, %c0_i32_0 : i32, i32
  }
}

</mosaic_0001>

<llo_original>
// kernel: tpu_custom_call.1
$region0: #{tpu_custom_call.1}
  #allocation0 [shape = 'u32[]', space=smem, size = 0x4, offset = 0x4, fixed_abs, tag = 'smem constant byte address 0x4 - core index']
  #allocation1 [shape = 'u32[144,128]{1,0:T(1,128)}', space=vmem, size = 0x12000, scoped, tag = 'internal scratch']
  %s0 = inlined_call_operand.vmem [shape: f32[32,8], index: 0, kind: input, shape index: {}]
  %s1 = inlined_call_operand.vmem [shape: f32[8,32], index: 1, kind: input, shape index: {}]
  %s2 = inlined_call_operand.vmem [shape: f32[1,32], index: 2, kind: input, shape index: {}]
  %s3 = inlined_call_operand.vmem [shape: f32[32,32], index: 3, kind: input, shape index: {}]
  %s4 = inlined_call_operand.vmem [shape: f32[1,32], index: 4, kind: input, shape index: {}]
  %s5 = inlined_call_operand.hbm [shape: f32[32,32], index: 5, kind: output, shape index: {}]
  %s6 = sld [smem:[#allocation0]]
  $region30: #{tpu_custom_call.1} parent=0
    _
  %s8 = ssub.s32 1, %s6
  %s9 = scalar_select 0, %s8, %s6
  $region1: #{tpu_custom_call.1} parent=0
    #allocation2 [shape = 'u8[16384]{0}', space=vmem, size = 0x4000, scoped, tag = 'output window, operand 0, single buffered']
    #allocation3 [shape = 's32[1]{0}', space=sflag, size = 0x4, scoped, tag = 'scoped memory for tpu_custom_call.1']
    %10 = vsyncpa [#allocation3], 0
    // Predicated region
    $region2: #{tpu_custom_call.1} parent=1 // pred_check
      _
    $region3: #{tpu_custom_call.1} parent=1 // pred_check_branch
      %12 = sbr.rel (0) target = $region5
    $region4: #{tpu_custom_call.1} parent=1 // pred_region
      _
    $region5: #{tpu_custom_call.1} parent=1 // pred_fallthru
      _
    // Predicated region
    $region6: #{tpu_custom_call.1} parent=1 // pred_check
      _
    $region7: #{tpu_custom_call.1} parent=1 // pred_check_branch
      %14 = sbr.rel (0) target = $region9
    $region8: #{tpu_custom_call.1} parent=1 // pred_region
      _
    $region9: #{tpu_custom_call.1} parent=1 // pred_fallthru
      _
    // Predicated region
    $region10: #{tpu_custom_call.1} parent=1 // pred_check
      _
    $region11: #{tpu_custom_call.1} parent=1 // pred_check_branch
      %16 = sbr.rel (0) target = $region13
    $region12: #{tpu_custom_call.1} parent=1 // pred_region
      _
    $region13: #{tpu_custom_call.1} parent=1 // pred_fallthru
      _
    // Predicated region
    $region14: #{tpu_custom_call.1} parent=1 // pred_check
      _
    $region15: #{tpu_custom_call.1} parent=1 // pred_check_branch
      %18 = sbr.rel (0) target = $region17
    $region16: #{tpu_custom_call.1} parent=1 // pred_region
      _
    $region17: #{tpu_custom_call.1} parent=1 // pred_fallthru
      _
    // Predicated region
    $region18: #{tpu_custom_call.1} parent=1 // pred_check
      _
    $region19: #{tpu_custom_call.1} parent=1 // pred_check_branch
      %20 = sbr.rel (0) target = $region21
    $region20: #{tpu_custom_call.1} parent=1 // pred_region
      _
    $region21: #{tpu_custom_call.1} parent=1 // pred_fallthru
      _
    %v22 = vld [vmem:[%s0] sm:$0xff]
    %v23 = vld [vmem:[%s0 + $0x8] sm:$0xff]
    %v24 = vld [vmem:[%s0 + $0x10] sm:$0xff]
    %v25 = vld [vmem:[%s0 + $0x18] sm:$0xff]
    %v26 = vpack.c.bf16 %v23, %v22
    %v27 = vpack.c.bf16 %v25, %v24
    %v28 = vld [vmem:[%s1] sm:$0xff]
    %v29 = vpack.c.bf16 %v28, %v28
    %v30 = vld [vmem:[%s2] sm:$0x1]
    %v32 = vlaneseq
    %v33 = vshrl.u32 %v32, 7
    %v34 = vsub.s32 0, %v33
    %v35 = vrot.slane %v30, %v34
    %vm37 = vcmask 64512
    %v39 = vsel %vm37, %v26, 0
    %v42 = vsel %vm37, %v27, 0
    %vm44 = vcmask 1043456
    %v46 = vsel %vm44, %v29, 0
    %48 = vmatprep.subr.bf16.mxu0 0
    %49 = vmatpush1.bf16.msra.mxu0 0
    %50 = vmatprep.subr.bf16.mxu0 0
    %51 = vmatpush1.bf16.msra.mxu0 0
    %52 = vmatprep.subr.bf16.mxu0 0
    %53 = vmatpush1.bf16.msra.mxu0 0
    %54 = vmatprep.subr.bf16.mxu0 0
    %55 = vmatpush1.bf16.msra.mxu0 0
    %56 = vmatprep.subr.bf16.mxu0 0
    %57 = vmatpush1.bf16.msra.mxu0 0
    %58 = vmatprep.subr.bf16.mxu0 0
    %59 = vmatpush1.bf16.msra.mxu0 0
    %60 = vmatprep.subr.bf16.mxu0 0
    %61 = vmatpush1.bf16.msra.mxu0 0
    %62 = vmatprep.subr.bf16.mxu0 0
    %63 = vmatpush1.bf16.msra.mxu0 %v46
    %64 = vmatprep.subr.bf16.mxu0 0
    %65 = vmatpush2.bf16.msra.mxu0 0
    %66 = vmatprep.subr.bf16.mxu0 0
    %67 = vmatpush2.bf16.msra.mxu0 0
    %68 = vmatprep.subr.bf16.mxu0 0
    %69 = vmatpush2.bf16.msra.mxu0 0
    %70 = vmatprep.subr.bf16.mxu0 0
    %71 = vmatpush2.bf16.msra.mxu0 0
    %72 = vmatprep.subr.bf16.mxu0 0
    %73 = vmatpush2.bf16.msra.mxu0 0
    %74 = vmatprep.subr.bf16.mxu0 0
    %75 = vmatpush2.bf16.msra.mxu0 0
    %76 = vmatprep.subr.bf16.mxu0 0
    %77 = vmatpush2.bf16.msra.mxu0 0
    %78 = vmatprep.subr.bf16.mxu0 0
    %79 = vmatpush2.bf16.msra.mxu0 0
    %80 = vmatprep.mubr.bf16.mxu0 0
    %81 = vmatmul.mubr.bf16.gmra.mxu0 %v39
    %v82 = vpop.f32.mrf.mxu0
    %v83 = vadd.f32 %v35, %v82
    %v84 = vpop.f32.mrf.mxu0
    %v85 = vpop.f32.mrf.mxu0
    %v86 = vadd.f32 %v35, %v85
    %v87 = vpop.f32.mrf.mxu0
    %88 = vmatprep.mubr.bf16.mxu0 0
    %89 = vmatmul.mubr.bf16.gmra.mxu0 %v42
    %v90 = vpop.f32.mrf.mxu0
    %v91 = vadd.f32 %v35, %v90
    %v92 = vpop.f32.mrf.mxu0
    %v93 = vpop.f32.mrf.mxu0
    %v94 = vadd.f32 %v35, %v93
    %v95 = vpop.f32.mrf.mxu0
    %96 = vdwg.mxu0
    %v97 = vmul.f32 %v83, 0.999995
    %v98 = vmul.f32 %v86, 0.999995
    %v99 = vmul.f32 %v91, 0.999995
    %v100 = vmul.f32 %v94, 0.999995
    %v101 = vmax.f32 %v97, 0.0
    %v102 = vmax.f32 %v98, 0.0
    %v103 = vmax.f32 %v99, 0.0
    %v104 = vmax.f32 %v100, 0.0
    %v105 = vpack.c.bf16 %v102, %v101
    %v106 = vpack.c.bf16 %v104, %v103
    %v107 = vld [vmem:[%s3] sm:$0xff]
    %v108 = vld [vmem:[%s3 + $0x8] sm:$0xff]
    %v109 = vld [vmem:[%s3 + $0x10] sm:$0xff]
    %v110 = vld [vmem:[%s3 + $0x18] sm:$0xff]
    %v111 = vpack.c.bf16 %v108, %v107
    %v112 = vpack.c.bf16 %v110, %v109
    %v113 = vld [vmem:[%s4] sm:$0x1]
    %v115 = vlaneseq
    %v116 = vshrl.u32 %v115, 7
    %v117 = vsub.s32 0, %v116
    %v118 = vrot.slane %v113, %v117
    %vm120 = vcmask 261120
    %v122 = vsel %vm120, %v105, 0
    %v125 = vsel %vm120, %v106, 0
    %127 = vmatprep.subr.bf16.mxu0 0
    %128 = vmatpush1.bf16.msra.mxu0 0
    %129 = vmatprep.subr.bf16.mxu0 0
    %130 = vmatpush1.bf16.msra.mxu0 0
    %131 = vmatprep.subr.bf16.mxu0 0
    %132 = vmatpush1.bf16.msra.mxu0 0
    %133 = vmatprep.subr.bf16.mxu0 0
    %134 = vmatpush1.bf16.msra.mxu0 0
    %135 = vmatprep.subr.bf16.mxu0 0
    %136 = vmatpush1.bf16.msra.mxu0 0
    %137 = vmatprep.subr.bf16.mxu0 0
    %138 = vmatpush1.bf16.msra.mxu0 0
    %139 = vmatprep.subr.bf16.mxu0 0
    %140 = vmatpush1.bf16.msra.mxu0 %v112
    %141 = vmatprep.subr.bf16.mxu0 0
    %142 = vmatpush1.bf16.msra.mxu0 %v111
    %143 = vmatprep.subr.bf16.mxu0 0
    %144 = vmatpush2.bf16.msra.mxu0 0
    %145 = vmatprep.subr.bf16.mxu0 0
    %146 = vmatpush2.bf16.msra.mxu0 0
    %147 = vmatprep.subr.bf16.mxu0 0
    %148 = vmatpush2.bf16.msra.mxu0 0
    %149 = vmatprep.subr.bf16.mxu0 0
    %150 = vmatpush2.bf16.msra.mxu0 0
    %151 = vmatprep.subr.bf16.mxu0 0
    %152 = vmatpush2.bf16.msra.mxu0 0
    %153 = vmatprep.subr.bf16.mxu0 0
    %154 = vmatpush2.bf16.msra.mxu0 0
    %155 = vmatprep.subr.bf16.mxu0 0
    %156 = vmatpush2.bf16.msra.mxu0 0
    %157 = vmatprep.subr.bf16.mxu0 0
    %158 = vmatpush2.bf16.msra.mxu0 0
    %159 = vmatprep.mubr.bf16.mxu0 0
    %160 = vmatmul.mubr.bf16.gmra.mxu0 %v122
    %v161 = vpop.f32.mrf.mxu0
    %v162 = vadd.f32 %v118, %v161
    %v163 = vpop.f32.mrf.mxu0
    %v164 = vpop.f32.mrf.mxu0
    %v165 = vadd.f32 %v118, %v164
    %v166 = vpop.f32.mrf.mxu0
    %167 = vmatprep.mubr.bf16.mxu0 0
    %168 = vmatmul.mubr.bf16.gmra.mxu0 %v125
    %v169 = vpop.f32.mrf.mxu0
    %v170 = vadd.f32 %v118, %v169
    %v171 = vpop.f32.mrf.mxu0
    %v172 = vpop.f32.mrf.mxu0
    %v173 = vadd.f32 %v118, %v172
    %v174 = vpop.f32.mrf.mxu0
    %175 = vdwg.mxu0
    %v176 = vmul.f32 %v162, 0.999995
    %v177 = vmul.f32 %v165, 0.999995
    %v178 = vmul.f32 %v170, 0.999995
    %v179 = vmul.f32 %v173, 0.999995
    %v180 = vmax.f32 %v176, 0.0
    %v181 = vmax.f32 %v177, 0.0
    %v182 = vmax.f32 %v178, 0.0
    %v183 = vmax.f32 %v179, 0.0
    %184 = vst.msk [vmem:[#allocation2] sm:$0xff] %vm120, %v180
    %185 = vst.msk [vmem:[#allocation2 + $0x8] sm:$0xff] %vm120, %v181
    %186 = vst.msk [vmem:[#allocation2 + $0x10] sm:$0xff] %vm120, %v182
    %187 = vst.msk [vmem:[#allocation2 + $0x18] sm:$0xff] %vm120, %v183
    // Predicated region
    $region22: #{tpu_custom_call.1} parent=1 // pred_check
      _
    $region23: #{tpu_custom_call.1} parent=1 // pred_check_branch
      %189 = sbr.rel (0) target = $region25
    $region24: #{tpu_custom_call.1} parent=1 // pred_region
      %s191 = ssub.s32 512, 512
      %192 = vsyncadd [#allocation3], %s191
      %s193 = sshll.u32 [#allocation2], 4
      %s194 = int_to_ptr.vmem [resolvable:$true] %s193
      %199 = dma.vmem_to_hbm [thread:$0]  %s194, 512, %s5, [#allocation3], 128, 128, 8
    $region25: #{tpu_custom_call.1} parent=1 // pred_fallthru
      _
    // Predicated region
    $region26: #{tpu_custom_call.1} parent=1 // pred_check
      _
    $region27: #{tpu_custom_call.1} parent=1 // pred_check_branch
      %201 = sbr.rel (0) target = $region29
    $region28: #{tpu_custom_call.1} parent=1 // pred_region
      %202 = dma.done [#allocation3], 512
    $region29: #{tpu_custom_call.1} parent=1 // pred_fallthru
      _
    %203 = vsyncpa [#allocation3], 1

</llo_original>
